<compile_context>
chip_gen: v6e
topology: v6e:2x2x1
jax: 0.10.0
libtpu: 0.0.40
codegen_flags: <defaults>
</compile_context>

<pallas_src>
import functools

import jax
import jax.numpy as jnp
from jax import lax
from jax.experimental import pallas as pl
from jax.experimental.pallas import tpu as pltpu

_SENT_ROW = -2147483648  # label sentinel for padded anchor rows
_SENT_COL = -2147483647  # label sentinel for padded candidate columns (distinct)


def _triplet_tile_kernel(emb_r_ref, emb_cT_ref, sqr_ref, sqc_ref,
                         lab_r_ref, lab_c_ref, out_ref, hp2_ref, hn2_ref,
                         *, margin, tile_m, tile_n):
    i = pl.program_id(0)
    j = pl.program_id(1)

    @pl.when(j == 0)
    def _init():
        hp2_ref[...] = jnp.zeros(hp2_ref.shape, jnp.float32)
        hn2_ref[...] = jnp.full(hn2_ref.shape, jnp.inf, jnp.float32)

    # Gram tile on the MXU; RHS is pre-transposed (K-major) in the wrapper.
    gram = jnp.dot(emb_r_ref[...], emb_cT_ref[...],
                   preferred_element_type=jnp.float32)            # (TM, TN) f32

    # Squared pairwise distances.  No full-tile clamp: hp2 is a max with a 0 init
    # over 0-masked entries, and hn2 is clamped once (a (TM,1) vector) at finalize.
    d2 = (sqr_ref[...] + sqc_ref[...]) - 2.0 * gram               # (TM, TN)

    lab_r = lab_r_ref[...]                                        # (TM, 1) int32
    lab_c = lab_c_ref[...]                                        # (1, TN) int32
    labels_eq = lab_r == lab_c       # padded cols carry a sentinel -> False vs real rows

    row_g = lax.broadcasted_iota(jnp.int32, (tile_m, 1), 0) + i * tile_m
    col_g = lax.broadcasted_iota(jnp.int32, (1, tile_n), 1) + j * tile_n
    not_diag = row_g != col_g                                     # broadcast compare

    # Positives: same label, not self.  Padded columns already fail labels_eq.
    pos_vals = jnp.where(labels_eq & not_diag, d2, 0.0)
    # Negatives: reference takes min over dist * (labels != labels), so same-label
    # entries contribute 0.  Padded columns have +inf squared norm -> d2 = +inf,
    # the identity of the running min.
    neg_vals = jnp.where(labels_eq, 0.0, d2)

    hp2_ref[...] = jnp.maximum(hp2_ref[...],
                               jnp.max(pos_vals, axis=1, keepdims=True))
    hn2_ref[...] = jnp.minimum(hn2_ref[...],
                               jnp.min(neg_vals, axis=1, keepdims=True))

    @pl.when(j == pl.num_programs(1) - 1)
    def _finalize():
        hardest_pos = jnp.sqrt(hp2_ref[...])
        # Clamp only here: tiny negative d2 from rounding between near-identical
        # different-label embeddings must not produce NaN.
        hardest_neg = jnp.sqrt(jnp.maximum(hn2_ref[...], 0.0))
        out_ref[...] = jnp.maximum(hardest_pos - hardest_neg + margin, 0.0)


def _round_up(x, m):
    return ((x + m - 1) // m) * m


def batch_hard_triplet_loss(embeddings, labels, margin=0.5, *,
                            tile_m=None, tile_n=None):
    """embeddings: [B, D] float (f32 or bf16), labels: [B] int -> scalar f32 loss."""
    B, D = embeddings.shape
    itemsize = jnp.dtype(embeddings.dtype).itemsize

    kind = ""
    try:
        kind = jax.devices()[0].device_kind.lower()
    except Exception:  # pragma: no cover - defensive
        pass
    is_v7 = ("v7" in kind) or ("7x" in kind)
    # v7x has 64 MiB VMEM per TC -> keep the scoped limit modest; v5e/v6e have 128 MiB.
    vmem_limit = (48 if is_v7 else 96) * 1024 * 1024

    if tile_m is None or tile_n is None:
        if B <= 1024:
            # >=2 row tiles so the "parallel" anchor axis can be split across both
            # TensorCores on v7x; lane (column) tile rounded to a multiple of 128.
            tm = _round_up(-(-B // 2), 8)
            tn = min(_round_up(B, 128), 2048)
        else:
            # Large batches: big tiles on v5e/v6e (128 MiB VMEM, lower HBM BW),
            # smaller tiles on v7x (64 MiB VMEM, 3.2 TB/s HBM).
            tm, tn = (256, 512) if is_v7 else (512, 1024)

        # Alignment-preserving shrink until double-buffered operands plus per-tile
        # f32 temporaries fit comfortably inside the scoped VMEM budget.
        def _cost(m, n):
            return 2 * (m + n) * D * itemsize + 6 * m * n * 4

        budget = vmem_limit // 2
        while tn > 128 and _cost(tm, tn) > budget:
            tn = max(128, ((tn // 2) // 128) * 128)
        while tm > 8 and _cost(tm, tn) > budget:
            tm = max(8, ((tm // 2) // 8) * 8)

        tile_m = tm if tile_m is None else tile_m
        tile_n = tn if tile_n is None else tile_n

    # Rows and columns are padded independently (no lcm blowup).
    b_rows = _round_up(B, tile_m)
    b_cols = _round_up(B, tile_n)

    x = embeddings                       # native dtype (bf16 feeds the MXU directly)
    lab = labels.astype(jnp.int32)

    x_rows = jnp.pad(x, ((0, b_rows - B), (0, 0))) if b_rows != B else x
    x_cols = jnp.pad(x, ((0, b_cols - B), (0, 0))) if b_cols != B else x
    x_cols_t = x_cols.T                  # (D, b_cols) K-major RHS for the MXU

    # Squared norms hoisted out of the kernel (f32).  Padded columns get +inf so
    # their squared distance is +inf (neutral for the hardest-negative min).
    xf = embeddings.astype(jnp.float32)
    sq = jnp.sum(xf * xf, axis=-1)                                       # (B,)
    sq_rows = jnp.pad(sq, (0, b_rows - B)).reshape(b_rows, 1)
    sq_cols = jnp.pad(sq, (0, b_cols - B),
                      constant_values=jnp.inf).reshape(1, b_cols)

    lab_rows = jnp.pad(lab, (0, b_rows - B),
                       constant_values=_SENT_ROW).reshape(b_rows, 1)
    lab_cols = jnp.pad(lab, (0, b_cols - B),
                       constant_values=_SENT_COL).reshape(1, b_cols)

    grid = (b_rows // tile_m, b_cols // tile_n)

    kernel = functools.partial(
        _triplet_tile_kernel,
        margin=float(margin), tile_m=tile_m, tile_n=tile_n)

    per_anchor = pl.pallas_call(
        kernel,
        out_shape=jax.ShapeDtypeStruct((b_rows, 1), jnp.float32),
        grid_spec=pltpu.PrefetchScalarGridSpec(
            num_scalar_prefetch=0,
            grid=grid,
            in_specs=[
                pl.BlockSpec((tile_m, D), lambda i, j: (i, 0)),   # anchor rows
                pl.BlockSpec((D, tile_n), lambda i, j: (0, j)),   # candidate cols (K-major)
                pl.BlockSpec((tile_m, 1), lambda i, j: (i, 0)),   # row squared norms
                pl.BlockSpec((1, tile_n), lambda i, j: (0, j)),   # col squared norms
                pl.BlockSpec((tile_m, 1), lambda i, j: (i, 0)),   # row labels
                pl.BlockSpec((1, tile_n), lambda i, j: (0, j)),   # col labels
            ],
            out_specs=pl.BlockSpec((tile_m, 1), lambda i, j: (i, 0)),
            scratch_shapes=[
                pltpu.VMEM((tile_m, 1), jnp.float32),   # running max |d_ap|^2
                pltpu.VMEM((tile_m, 1), jnp.float32),   # running min |d_an|^2
            ],
        ),
        compiler_params=pltpu.CompilerParams(
            dimension_semantics=("parallel", "arbitrary"),
            vmem_limit_bytes=vmem_limit,
        ),
    )(x_rows, x_cols_t, sq_rows, sq_cols, lab_rows, lab_cols)

    # Final reduction over B scalars: valid-masked mean + NaN guard, as in the module.
    tl = per_anchor[:B, 0]
    valid = tl > 1e-16
    loss = jnp.sum(jnp.where(valid, tl, 0.0)) / (
        jnp.sum(valid).astype(jnp.float32) + 1e-16)
    return jnp.where(jnp.isnan(loss), 0.0, loss)


def _reference(embeddings, labels, margin=0.5):
    # Pure-JAX mirror of the PyTorch module, for the correctness check.
    x = embeddings.astype(jnp.float32)
    sq = jnp.sum(x * x, axis=-1)
    gram = jnp.dot(x, x.T, precision=lax.Precision.HIGHEST)
    dist = jnp.sqrt(jnp.maximum(sq[:, None] + sq[None, :] - 2.0 * gram, 0.0))
    eq = labels[:, None] == labels[None, :]
    eye = jnp.eye(labels.shape[0], dtype=bool)
    hp = jnp.max(dist * (eq & ~eye).astype(jnp.float32), axis=1, keepdims=True)
    hn = jnp.min(dist * (~eq).astype(jnp.float32), axis=1, keepdims=True)
    tl = jnp.maximum(hp - hn + margin, 0.0)
    valid = tl > 1e-16
    loss = jnp.sum(jnp.where(valid, tl, 0.0)) / (
        jnp.sum(valid).astype(jnp.float32) + 1e-16)
    return jnp.where(jnp.isnan(loss), 0.0, loss)


if __name__ == "__main__":
    k0, k1, k2, k3 = jax.random.split(jax.random.PRNGKey(0), 4)

    # Case 1: small batch, non-multiple-of-8 B.  Heuristic picks >=2 row tiles
    # (tile_m=32, tile_n=128) with different row/col padding (64 vs 128).
    B1, D1 = 60, 128
    emb1 = jax.random.normal(k0, (B1, D1), dtype=jnp.float32)
    lab1 = jax.random.randint(k1, (B1,), 0, 8, dtype=jnp.int32)
    out1 = jax.block_until_ready(batch_hard_triplet_loss(emb1, lab1, margin=0.5))
    ref1 = _reference(emb1, lab1, margin=0.5)
    assert jnp.allclose(out1, ref1, atol=1e-3, rtol=1e-3), (out1, ref1)

    # Case 2: explicit 128x128 tiles -> 2x2 grid with padded rows/columns.
    # Exercises the running reductions, per-tile diagonal offsets and the
    # pl.when init/finalize path.
    B2, D2 = 200, 128
    emb2 = jax.random.normal(k2, (B2, D2), dtype=jnp.float32)
    lab2 = jax.random.randint(k3, (B2,), 0, 16, dtype=jnp.int32)
    out2 = jax.block_until_ready(
        batch_hard_triplet_loss(emb2, lab2, margin=0.5, tile_m=128, tile_n=128))
    ref2 = _reference(emb2, lab2, margin=0.5)
    assert jnp.allclose(out2, ref2, atol=1e-3, rtol=1e-3), (out2, ref2)

    print("KERNEL_OK")
</pallas_src>

<mosaic_0001>
module attributes {stable_mosaic.version = 11 : i64} {
  func.func @_triplet_tile_kernel(%arg0: i32, %arg1: i32, %arg2: memref<32x128xf32, #tpu.memory_space<vmem>>, %arg3: memref<128x128xf32, #tpu.memory_space<vmem>>, %arg4: memref<32x1xf32, #tpu.memory_space<vmem>>, %arg5: memref<1x128xf32, #tpu.memory_space<vmem>>, %arg6: memref<32x1xi32, #tpu.memory_space<vmem>>, %arg7: memref<1x128xi32, #tpu.memory_space<vmem>>, %arg8: memref<32x1xf32, #tpu.memory_space<vmem>>, %arg9: memref<32x1xf32, #tpu.memory_space<vmem>>, %arg10: memref<32x1xf32, #tpu.memory_space<vmem>>) attributes {dimension_semantics = [#tpu.dimension_semantics<parallel>, #tpu.dimension_semantics<arbitrary>], iteration_bounds = array<i64: 2, 1>, scalar_prefetch = 0 : i64, scratch_operands = 2 : i64, tpu.core_type = #tpu.core_type<tc>, window_params = [{transform_indices = @transform_0, window_bounds = array<i64: 32, 128>}, {transform_indices = @transform_1, window_bounds = array<i64: 128, 128>}, {transform_indices = @transform_2, window_bounds = array<i64: 32, 1>}, {transform_indices = @transform_3, window_bounds = array<i64: 1, 128>}, {transform_indices = @transform_4, window_bounds = array<i64: 32, 1>}, {transform_indices = @transform_5, window_bounds = array<i64: 1, 128>}, {transform_indices = @transform_6, window_bounds = array<i64: 32, 1>}]} {
    %c0_i32 = arith.constant 0 : i32
    %0 = arith.cmpi eq, %arg1, %c0_i32 : i32
    %1 = arith.extui %0 : i1 to i32
    %c0_i32_0 = arith.constant 0 : i32
    %2 = arith.cmpi ne, %1, %c0_i32_0 : i32
    scf.if %2 {
      %cst_27 = arith.constant 0.000000e+00 : f32
      %48 = vector.broadcast %cst_27 : f32 to vector<32x1xf32>
      %c0_28 = arith.constant 0 : index
      %c0_29 = arith.constant 0 : index
      %49 = vector.load %arg9[%c0_28, %c0_29] : memref<32x1xf32, #tpu.memory_space<vmem>>, vector<32x1xf32>
      tpu.vector_store %arg9[%c0_28, %c0_29], %48 {strides = array<i32>} : memref<32x1xf32, #tpu.memory_space<vmem>>, vector<32x1xf32>,
      %cst_30 = arith.constant 0x7F800000 : f32
      %50 = vector.broadcast %cst_30 : f32 to vector<32x1xf32>
      %c0_31 = arith.constant 0 : index
      %c0_32 = arith.constant 0 : index
      %51 = vector.load %arg10[%c0_31, %c0_32] : memref<32x1xf32, #tpu.memory_space<vmem>>, vector<32x1xf32>
      tpu.vector_store %arg10[%c0_31, %c0_32], %50 {strides = array<i32>} : memref<32x1xf32, #tpu.memory_space<vmem>>, vector<32x1xf32>,
    } else {
    }
    %c0 = arith.constant 0 : index
    %c0_1 = arith.constant 0 : index
    %3 = vector.load %arg2[%c0, %c0_1] : memref<32x128xf32, #tpu.memory_space<vmem>>, vector<32x128xf32>
    %c0_2 = arith.constant 0 : index
    %c0_3 = arith.constant 0 : index
    %4 = vector.load %arg3[%c0_2, %c0_3] : memref<128x128xf32, #tpu.memory_space<vmem>>, vector<128x128xf32>
    %cst = arith.constant dense<0.000000e+00> : vector<32x128xf32>
    %5 = tpu.matmul %3, %4, %cst {dimension_numbers = #tpu.dot_dimension_numbers<[1], [0], [0], [1], [0, 0, 1, 1], [], []>} : vector<32x128xf32>, vector<128x128xf32>, vector<32x128xf32> -> vector<32x128xf32>
    %c0_4 = arith.constant 0 : index
    %c0_5 = arith.constant 0 : index
    %6 = vector.load %arg4[%c0_4, %c0_5] : memref<32x1xf32, #tpu.memory_space<vmem>>, vector<32x1xf32>
    %c0_6 = arith.constant 0 : index
    %c0_7 = arith.constant 0 : index
    %7 = vector.load %arg5[%c0_6, %c0_7] : memref<1x128xf32, #tpu.memory_space<vmem>>, vector<1x128xf32>
    %8 = vector.broadcast %6 : vector<32x1xf32> to vector<32x128xf32>
    %9 = vector.broadcast %7 : vector<1x128xf32> to vector<32x128xf32>
    %10 = arith.addf %8, %9 : vector<32x128xf32>
    %cst_8 = arith.constant 2.000000e+00 : f32
    %11 = vector.broadcast %cst_8 : f32 to vector<32x128xf32>
    %12 = arith.mulf %11, %5 : vector<32x128xf32>
    %13 = arith.subf %10, %12 : vector<32x128xf32>
    %c0_9 = arith.constant 0 : index
    %c0_10 = arith.constant 0 : index
    %14 = vector.load %arg6[%c0_9, %c0_10] : memref<32x1xi32, #tpu.memory_space<vmem>>, vector<32x1xi32>
    %c0_11 = arith.constant 0 : index
    %c0_12 = arith.constant 0 : index
    %15 = vector.load %arg7[%c0_11, %c0_12] : memref<1x128xi32, #tpu.memory_space<vmem>>, vector<1x128xi32>
    %16 = vector.broadcast %14 : vector<32x1xi32> to vector<32x128xi32>
    %17 = vector.broadcast %15 : vector<1x128xi32> to vector<32x128xi32>
    %18 = arith.cmpi eq, %16, %17 : vector<32x128xi32>
    %19 = tpu.iota {dimensions = array<i32: 0>} : vector<32x1xi32>
    %c32_i32 = arith.constant 32 : i32
    %20 = arith.muli %arg0, %c32_i32 : i32
    %21 = vector.broadcast %20 : i32 to vector<32x1xi32>
    %22 = arith.addi %19, %21 : vector<32x1xi32>
    %23 = tpu.iota {dimensions = array<i32: 1>} : vector<1x128xi32>
    %c128_i32 = arith.constant 128 : i32
    %24 = arith.muli %arg1, %c128_i32 : i32
    %25 = vector.broadcast %24 : i32 to vector<1x128xi32>
    %26 = arith.addi %23, %25 : vector<1x128xi32>
    %27 = vector.broadcast %22 : vector<32x1xi32> to vector<32x128xi32>
    %28 = vector.broadcast %26 : vector<1x128xi32> to vector<32x128xi32>
    %29 = arith.cmpi ne, %27, %28 : vector<32x128xi32>
    %30 = arith.andi %18, %29 : vector<32x128xi1>
    %cst_13 = arith.constant 0.000000e+00 : f32
    %31 = vector.broadcast %cst_13 : f32 to vector<32x128xf32>
    %32 = arith.select %30, %13, %31 : vector<32x128xi1>, vector<32x128xf32>
    %cst_14 = arith.constant 0.000000e+00 : f32
    %33 = vector.broadcast %cst_14 : f32 to vector<32x128xf32>
    %34 = arith.select %18, %33, %13 : vector<32x128xi1>, vector<32x128xf32>
    %c0_15 = arith.constant 0 : index
    %c0_16 = arith.constant 0 : index
    %35 = vector.load %arg9[%c0_15, %c0_16] : memref<32x1xf32, #tpu.memory_space<vmem>>, vector<32x1xf32>
    %cst_17 = arith.constant dense<0xFF800000> : vector<32xf32>
    %36 = vector.multi_reduction <maximumf>, %32, %cst_17 [1] : vector<32x128xf32> to vector<32xf32>
    %37 = vector.shape_cast %36 : vector<32xf32> to vector<32x1xf32>
    %38 = arith.maximumf %35, %37 : vector<32x1xf32>
    %c0_18 = arith.constant 0 : index
    %c0_19 = arith.constant 0 : index
    %39 = vector.load %arg9[%c0_18, %c0_19] : memref<32x1xf32, #tpu.memory_space<vmem>>, vector<32x1xf32>
    tpu.vector_store %arg9[%c0_18, %c0_19], %38 {strides = array<i32>} : memref<32x1xf32, #tpu.memory_space<vmem>>, vector<32x1xf32>,
    %c0_20 = arith.constant 0 : index
    %c0_21 = arith.constant 0 : index
    %40 = vector.load %arg10[%c0_20, %c0_21] : memref<32x1xf32, #tpu.memory_space<vmem>>, vector<32x1xf32>
    %cst_22 = arith.constant dense<0x7F800000> : vector<32xf32>
    %41 = vector.multi_reduction <minimumf>, %34, %cst_22 [1] : vector<32x128xf32> to vector<32xf32>
    %42 = vector.shape_cast %41 : vector<32xf32> to vector<32x1xf32>
    %43 = arith.minimumf %40, %42 : vector<32x1xf32>
    %c0_23 = arith.constant 0 : index
    %c0_24 = arith.constant 0 : index
    %44 = vector.load %arg10[%c0_23, %c0_24] : memref<32x1xf32, #tpu.memory_space<vmem>>, vector<32x1xf32>
    tpu.vector_store %arg10[%c0_23, %c0_24], %43 {strides = array<i32>} : memref<32x1xf32, #tpu.memory_space<vmem>>, vector<32x1xf32>,
    %c0_i32_25 = arith.constant 0 : i32
    %45 = arith.cmpi eq, %arg1, %c0_i32_25 : i32
    %46 = arith.extui %45 : i1 to i32
    %c0_i32_26 = arith.constant 0 : i32
    %47 = arith.cmpi ne, %46, %c0_i32_26 : i32
    scf.if %47 {
      %c0_27 = arith.constant 0 : index
      %c0_28 = arith.constant 0 : index
      %48 = vector.load %arg9[%c0_27, %c0_28] : memref<32x1xf32, #tpu.memory_space<vmem>>, vector<32x1xf32>
      %49 = math.sqrt %48 : vector<32x1xf32>
      %c0_29 = arith.constant 0 : index
      %c0_30 = arith.constant 0 : index
      %50 = vector.load %arg10[%c0_29, %c0_30] : memref<32x1xf32, #tpu.memory_space<vmem>>, vector<32x1xf32>
      %cst_31 = arith.constant 0.000000e+00 : f32
      %51 = vector.broadcast %cst_31 : f32 to vector<32x1xf32>
      %52 = arith.maximumf %50, %51 : vector<32x1xf32>
      %53 = math.sqrt %52 : vector<32x1xf32>
      %54 = arith.subf %49, %53 : vector<32x1xf32>
      %cst_32 = arith.constant 5.000000e-01 : f32
      %55 = vector.broadcast %cst_32 : f32 to vector<32x1xf32>
      %56 = arith.addf %54, %55 : vector<32x1xf32>
      %cst_33 = arith.constant 0.000000e+00 : f32
      %57 = vector.broadcast %cst_33 : f32 to vector<32x1xf32>
      %58 = arith.maximumf %56, %57 : vector<32x1xf32>
      %c0_34 = arith.constant 0 : index
      %c0_35 = arith.constant 0 : index
      %59 = vector.load %arg8[%c0_34, %c0_35] : memref<32x1xf32, #tpu.memory_space<vmem>>, vector<32x1xf32>
      tpu.vector_store %arg8[%c0_34, %c0_35], %58 {strides = array<i32>} : memref<32x1xf32, #tpu.memory_space<vmem>>, vector<32x1xf32>,
    } else {
    }
    return
  }
  func.func @transform_0(%arg0: i32, %arg1: i32) -> (i32, i32) {
    %c0_i32 = arith.constant 0 : i32
    %c0_i32_0 = arith.constant 0 : i32
    return %arg0, %c0_i32 : i32, i32
  }
  func.func @transform_1(%arg0: i32, %arg1: i32) -> (i32, i32) {
    %c0_i32 = arith.constant 0 : i32
    %c0_i32_0 = arith.constant 0 : i32
    return %c0_i32, %arg1 : i32, i32
  }
  func.func @transform_2(%arg0: i32, %arg1: i32) -> (i32, i32) {
    %c0_i32 = arith.constant 0 : i32
    %c0_i32_0 = arith.constant 0 : i32
    return %arg0, %c0_i32 : i32, i32
  }
  func.func @transform_3(%arg0: i32, %arg1: i32) -> (i32, i32) {
    %c0_i32 = arith.constant 0 : i32
    %c0_i32_0 = arith.constant 0 : i32
    return %c0_i32, %arg1 : i32, i32
  }
  func.func @transform_4(%arg0: i32, %arg1: i32) -> (i32, i32) {
    %c0_i32 = arith.constant 0 : i32
    %c0_i32_0 = arith.constant 0 : i32
    return %arg0, %c0_i32 : i32, i32
  }
  func.func @transform_5(%arg0: i32, %arg1: i32) -> (i32, i32) {
    %c0_i32 = arith.constant 0 : i32
    %c0_i32_0 = arith.constant 0 : i32
    return %c0_i32, %arg1 : i32, i32
  }
  func.func @transform_6(%arg0: i32, %arg1: i32) -> (i32, i32) {
    %c0_i32 = arith.constant 0 : i32
    %c0_i32_0 = arith.constant 0 : i32
    return %arg0, %c0_i32 : i32, i32
  }
}

</mosaic_0001>

<llo_original>
// kernel: tpu_custom_call.1
$region0: #{tpu_custom_call.1}
  #allocation0 [shape = 'u32[]', space=smem, size = 0x4, offset = 0x4, fixed_abs, tag = 'smem constant byte address 0x4 - core index']
  #allocation1 [shape = 'u32[144,128]{1,0:T(1,128)}', space=vmem, size = 0x12000, scoped, tag = 'internal scratch']
  #allocation2 [shape = 'f32[32,1]{1,0:T(8,128)}', space=vmem, size = 0x4000, scoped, tag = 'scratch operand']
  #allocation3 [shape = 'f32[32,1]{1,0:T(8,128)}', space=vmem, size = 0x4000, scoped, tag = 'scratch operand']
  %s0 = inlined_call_operand.hbm [shape: f32[64,128], index: 0, kind: input, shape index: {}]
  %s1 = inlined_call_operand.vmem [shape: f32[128,128], index: 1, kind: input, shape index: {}]
  %s2 = inlined_call_operand.vmem [shape: f32[64,1], index: 2, kind: input, shape index: {}]
  %s3 = inlined_call_operand.vmem [shape: f32[1,128], index: 3, kind: input, shape index: {}]
  %s4 = inlined_call_operand.vmem [shape: s32[64,1], index: 4, kind: input, shape index: {}]
  %s5 = inlined_call_operand.vmem [shape: s32[1,128], index: 5, kind: input, shape index: {}]
  %s6 = inlined_call_operand.vmem [shape: f32[64,1], index: 6, kind: output, shape index: {}]
  %s7 = sld [smem:[#allocation0]]
  $region69: #{tpu_custom_call.1} parent=0
    _
  %s9 = ssub.s32 1, %s7
  %s10 = scalar_select 0, %s9, %s7
  $region1: #{tpu_custom_call.1} parent=0
    #allocation4 [shape = 'u8[32768]{0}', space=vmem, size = 0x8000, scoped, tag = 'input window, operand 0']
    #allocation5 [shape = 's32[2]{0}', space=sflag, size = 0x8, scoped, tag = 'scoped memory for tpu_custom_call.1']
    %11 = vsyncpa [#allocation5], 0
    %s12 = scalar_lea.sflag [#allocation5], 1
    %13 = vsyncpa %s12, 0
    loop: start=0, step=1, limit=4
    $region2: #{tpu_custom_call.1} parent=1 // loop_pre_header
      _
    $region3: #{tpu_custom_call.1} parent=1 // loop_header
      %s15 = sphi 0, %s19
      %p16 = scmp.ge.s32.totalorder %s15, 4
      %s22 = sphi 0, %s34
      %s23 = sphi 0, %s30
      %s24 = sphi 0, %s22
      %s25 = sphi 0, %s23
      %s26 = sphi 0, %s24
      %s27 = sphi 0, %s25
      %s37 = sphi 0, %s39
      %s40 = sphi 0, %s37
      %s41 = sphi 0, %s40
      %s57 = sphi 0, %s41
      %s63 = sphi 0, %s65
      %s66 = sphi 0, %s63
      %s67 = sphi 0, %s66
      %s83 = sphi 0, %s67
      %s89 = sphi 0, %s91
      %s92 = sphi 0, %s89
      %s93 = sphi 0, %s92
      %s109 = sphi 0, %s93
      %s115 = sphi 0, %s117
      %s118 = sphi 0, %s115
      %s119 = sphi 0, %s118
      %s135 = sphi 0, %s119
      %s141 = sphi 0, %s143
      %s144 = sphi 0, %s141
      %s145 = sphi 0, %s144
      %s161 = sphi 0, %s145
      %s167 = sphi 0, %s169
      %s170 = sphi 0, %s167
      %s171 = sphi 0, %s170
      %s187 = sphi 0, %s171
      %s193 = sphi 0, %s195
      %s196 = sphi 0, %s193
      %s197 = sphi 0, %s196
      %s213 = sphi 0, %s197
    $region4: #{tpu_custom_call.1} parent=1 // loop_header_branch
      %18 = sbr.rel (%p16) target = $region8
    $region5: #{tpu_custom_call.1} parent=1 // loop_body
      %s20 = ssub.s32 %s15, 1
      %s21 = ssub.s32 %s15, 2
      %s28 = sadd.s32 1, %s23
      %p29 = scmp.ge.s32.totalorder %s28, 1
      %s30 = scalar_select %p29, 0, %s28
      %s31 = sadd.s32 1, %s22
      %s32 = scalar_select %p29, %s31, %s22
      %p33 = scmp.ge.s32.totalorder %s32, 2
      %s34 = scalar_select %p33, 0, %s32
      %s35 = ssub.s32 %s22, %s34
      %p36 = scmp.eq.s32.totalorder %s35, 0
      %s38 = sadd.s32 %s37, 1
      %s39 = scalar_select %p36, %s37, %s38
      %p42 = pneg %p36
      %p43 = scmp.eq.s32.totalorder %s15, 1
      %p44 = por %p42, %p43
      %p45 = scmp.ne.s32.totalorder %s37, %s40
      %p46 = scmp.eq.s32.totalorder %s15, 0
      %p47 = por %p45, %p46
      %p48 = scmp.ne.s32.totalorder %s37, %s40
      %p49 = scmp.eq.s32.totalorder %s20, 1
      %p50 = por %p48, %p49
      %p51 = scmp.ne.s32.totalorder %s40, %s41
      %p52 = scmp.eq.s32.totalorder %s20, 0
      %p53 = por %p51, %p52
      %p54 = scmp.ne.s32.totalorder %s40, %s41
      %p55 = scmp.eq.s32.totalorder %s21, 1
      %p56 = por %p54, %p55
      %p58 = scmp.ne.s32.totalorder %s41, %s57
      %p59 = scmp.eq.s32.totalorder %s21, 0
      %p60 = por %p58, %p59
      %s61 = ssub.s32 %s23, %s30
      %p62 = scmp.eq.s32.totalorder %s61, 0
      %s64 = sadd.s32 %s63, 1
      %s65 = scalar_select %p62, %s63, %s64
      %p68 = pneg %p62
      %p69 = scmp.eq.s32.totalorder %s15, 1
      %p70 = por %p68, %p69
      %p71 = scmp.ne.s32.totalorder %s63, %s66
      %p72 = scmp.eq.s32.totalorder %s15, 0
      %p73 = por %p71, %p72
      %p74 = scmp.ne.s32.totalorder %s63, %s66
      %p75 = scmp.eq.s32.totalorder %s20, 1
      %p76 = por %p74, %p75
      %p77 = scmp.ne.s32.totalorder %s66, %s67
      %p78 = scmp.eq.s32.totalorder %s20, 0
      %p79 = por %p77, %p78
      %p80 = scmp.ne.s32.totalorder %s66, %s67
      %p81 = scmp.eq.s32.totalorder %s21, 1
      %p82 = por %p80, %p81
      %p84 = scmp.ne.s32.totalorder %s67, %s83
      %p85 = scmp.eq.s32.totalorder %s21, 0
      %p86 = por %p84, %p85
      %s87 = ssub.s32 %s22, %s34
      %p88 = scmp.eq.s32.totalorder %s87, 0
      %s90 = sadd.s32 %s89, 1
      %s91 = scalar_select %p88, %s89, %s90
      %p94 = pneg %p88
      %p95 = scmp.eq.s32.totalorder %s15, 1
      %p96 = por %p94, %p95
      %p97 = scmp.ne.s32.totalorder %s89, %s92
      %p98 = scmp.eq.s32.totalorder %s15, 0
      %p99 = por %p97, %p98
      %p100 = scmp.ne.s32.totalorder %s89, %s92
      %p101 = scmp.eq.s32.totalorder %s20, 1
      %p102 = por %p100, %p101
      %p103 = scmp.ne.s32.totalorder %s92, %s93
      %p104 = scmp.eq.s32.totalorder %s20, 0
      %p105 = por %p103, %p104
      %p106 = scmp.ne.s32.totalorder %s92, %s93
      %p107 = scmp.eq.s32.totalorder %s21, 1
      %p108 = por %p106, %p107
      %p110 = scmp.ne.s32.totalorder %s93, %s109
      %p111 = scmp.eq.s32.totalorder %s21, 0
      %p112 = por %p110, %p111
      %s113 = ssub.s32 %s23, %s30
      %p114 = scmp.eq.s32.totalorder %s113, 0
      %s116 = sadd.s32 %s115, 1
      %s117 = scalar_select %p114, %s115, %s116
      %p120 = pneg %p114
      %p121 = scmp.eq.s32.totalorder %s15, 1
      %p122 = por %p120, %p121
      %p123 = scmp.ne.s32.totalorder %s115, %s118
      %p124 = scmp.eq.s32.totalorder %s15, 0
      %p125 = por %p123, %p124
      %p126 = scmp.ne.s32.totalorder %s115, %s118
      %p127 = scmp.eq.s32.totalorder %s20, 1
      %p128 = por %p126, %p127
      %p129 = scmp.ne.s32.totalorder %s118, %s119
      %p130 = scmp.eq.s32.totalorder %s20, 0
      %p131 = por %p129, %p130
      %p132 = scmp.ne.s32.totalorder %s118, %s119
      %p133 = scmp.eq.s32.totalorder %s21, 1
      %p134 = por %p132, %p133
      %p136 = scmp.ne.s32.totalorder %s119, %s135
      %p137 = scmp.eq.s32.totalorder %s21, 0
      %p138 = por %p136, %p137
      %s139 = ssub.s32 %s22, %s34
      %p140 = scmp.eq.s32.totalorder %s139, 0
      %s142 = sadd.s32 %s141, 1
      %s143 = scalar_select %p140, %s141, %s142
      %p146 = pneg %p140
      %p147 = scmp.eq.s32.totalorder %s15, 1
      %p148 = por %p146, %p147
      %p149 = scmp.ne.s32.totalorder %s141, %s144
      %p150 = scmp.eq.s32.totalorder %s15, 0
      %p151 = por %p149, %p150
      %p152 = scmp.ne.s32.totalorder %s141, %s144
      %p153 = scmp.eq.s32.totalorder %s20, 1
      %p154 = por %p152, %p153
      %p155 = scmp.ne.s32.totalorder %s144, %s145
      %p156 = scmp.eq.s32.totalorder %s20, 0
      %p157 = por %p155, %p156
      %p158 = scmp.ne.s32.totalorder %s144, %s145
      %p159 = scmp.eq.s32.totalorder %s21, 1
      %p160 = por %p158, %p159
      %p162 = scmp.ne.s32.totalorder %s145, %s161
      %p163 = scmp.eq.s32.totalorder %s21, 0
      %p164 = por %p162, %p163
      %s165 = ssub.s32 %s23, %s30
      %p166 = scmp.eq.s32.totalorder %s165, 0
      %s168 = sadd.s32 %s167, 1
      %s169 = scalar_select %p166, %s167, %s168
      %p172 = pneg %p166
      %p173 = scmp.eq.s32.totalorder %s15, 1
      %p174 = por %p172, %p173
      %p175 = scmp.ne.s32.totalorder %s167, %s170
      %p176 = scmp.eq.s32.totalorder %s15, 0
      %p177 = por %p175, %p176
      %p178 = scmp.ne.s32.totalorder %s167, %s170
      %p179 = scmp.eq.s32.totalorder %s20, 1
      %p180 = por %p178, %p179
      %p181 = scmp.ne.s32.totalorder %s170, %s171
      %p182 = scmp.eq.s32.totalorder %s20, 0
      %p183 = por %p181, %p182
      %p184 = scmp.ne.s32.totalorder %s170, %s171
      %p185 = scmp.eq.s32.totalorder %s21, 1
      %p186 = por %p184, %p185
      %p188 = scmp.ne.s32.totalorder %s171, %s187
      %p189 = scmp.eq.s32.totalorder %s21, 0
      %p190 = por %p188, %p189
      %s191 = ssub.s32 %s22, %s34
      %p192 = scmp.eq.s32.totalorder %s191, 0
      %s194 = sadd.s32 %s193, 1
      %s195 = scalar_select %p192, %s193, %s194
      %p198 = pneg %p192
      %p199 = scmp.eq.s32.totalorder %s15, 1
      %p200 = por %p198, %p199
      %p201 = scmp.ne.s32.totalorder %s193, %s196
      %p202 = scmp.eq.s32.totalorder %s15, 0
      %p203 = por %p201, %p202
      %p204 = scmp.ne.s32.totalorder %s193, %s196
      %p205 = scmp.eq.s32.totalorder %s20, 1
      %p206 = por %p204, %p205
      %p207 = scmp.ne.s32.totalorder %s196, %s197
      %p208 = scmp.eq.s32.totalorder %s20, 0
      %p209 = por %p207, %p208
      %p210 = scmp.ne.s32.totalorder %s196, %s197
      %p211 = scmp.eq.s32.totalorder %s21, 1
      %p212 = por %p210, %p211
      %p214 = scmp.ne.s32.totalorder %s197, %s213
      %p215 = scmp.eq.s32.totalorder %s21, 0
      %p216 = por %p214, %p215
      %p217 = scmp.le.s32.totalorder 1, %s15
      %p218 = scmp.lt.s32.totalorder %s15, 3
      %p219 = pnand %p217, %p218
      %p220 = pneg %p219
      // Predicated region
      $region9: #{tpu_custom_call.1} parent=5 // pred_check
        _
      $region10: #{tpu_custom_call.1} parent=5 // pred_check_branch
        %222 = sbr.rel (%p219) target = $region12
      $region11: #{tpu_custom_call.1} parent=5 // pred_region
        %s223 = ssub.s32 %s15, 1
        // Predicated region
        $region13: #{tpu_custom_call.1} parent=11 // pred_check
          %p224 = pneg %p79
        $region14: #{tpu_custom_call.1} parent=11 // pred_check_branch
          %226 = sbr.rel (%p224) target = $region16
        $region15: #{tpu_custom_call.1} parent=11 // pred_region
          %p227 = scmp.lt.s32.totalorder %s25, 0
          %s228 = scalar_select %p227, %s25, 0
          %s229 = smul.addr %s228, 8
          %s230 = scalar_lea.vmem %s1, %s229
        $region16: #{tpu_custom_call.1} parent=11 // pred_fallthru
          _
        // Predicated region
        $region17: #{tpu_custom_call.1} parent=11 // pred_check
          %p231 = pneg %p131
        $region18: #{tpu_custom_call.1} parent=11 // pred_check_branch
          %233 = sbr.rel (%p231) target = $region20
        $region19: #{tpu_custom_call.1} parent=11 // pred_region
          %p234 = scmp.lt.s32.totalorder %s25, 0
          %s235 = scalar_select %p234, %s25, 0
          %s236 = scalar_lea.vmem %s3, %s235
        $region20: #{tpu_custom_call.1} parent=11 // pred_fallthru
          _
        // Predicated region
        $region21: #{tpu_custom_call.1} parent=11 // pred_check
          %p237 = pneg %p183
        $region22: #{tpu_custom_call.1} parent=11 // pred_check_branch
          %239 = sbr.rel (%p237) target = $region24
        $region23: #{tpu_custom_call.1} parent=11 // pred_region
          %p240 = scmp.lt.s32.totalorder %s25, 0
          %s241 = scalar_select %p240, %s25, 0
          %s242 = scalar_lea.vmem %s5, %s241
        $region24: #{tpu_custom_call.1} parent=11 // pred_fallthru
          _
      $region12: #{tpu_custom_call.1} parent=5 // pred_fallthru
        _
      %p243 = scmp.lt.s32.totalorder %s15, 2
      // Predicated region
      $region25: #{tpu_custom_call.1} parent=5 // pred_check
        %p244 = pneg %p243
      $region26: #{tpu_custom_call.1} parent=5 // pred_check_branch
        %246 = sbr.rel (%p244) target = $region28
      $region27: #{tpu_custom_call.1} parent=5 // pred_region
        // Predicated region
        $region29: #{tpu_custom_call.1} parent=27 // pred_check
          %p247 = pneg %p47
        $region30: #{tpu_custom_call.1} parent=27 // pred_check_branch
          %249 = sbr.rel (%p247) target = $region32
        $region31: #{tpu_custom_call.1} parent=27 // pred_region
          %s250 = sand.u32 %s37, 1
          %s251 = scalar_lea.sflag [#allocation5], %s250
          %s252 = sand.u32 %s37, 1
          %s253 = smul.addr %s252, 32
          %s254 = scalar_lea.vmem [#allocation4], %s253
          %s255 = smul.u32 4, %s22
          %s257 = ssub.s32 512, 512
          %258 = vsyncadd %s251, %s257
          %s259 = smul.addr %s255, 128
          %s260 = scalar_lea.hbm %s0, %s259
          %s261 = sshll.u32 %s254, 4
          %s262 = int_to_ptr.vmem [resolvable:$true] %s261
          %267 = dma.hbm_to_vmem [thread:$0]  %s260, 512, %s262, %s251, 128, 128, 8
        $region32: #{tpu_custom_call.1} parent=27 // pred_fallthru
          _
        // Predicated region
        $region33: #{tpu_custom_call.1} parent=27 // pred_check
          %p268 = pneg %p99
        $region34: #{tpu_custom_call.1} parent=27 // pred_check_branch
          %270 = sbr.rel (%p268) target = $region36
        $region35: #{tpu_custom_call.1} parent=27 // pred_region
          %s271 = smul.u32 4, %s22
          %p272 = scmp.lt.s32.totalorder %s271, 7
          %s273 = scalar_select %p272, %s271, 7
          %s274 = smul.addr %s273, 8
          %s275 = scalar_lea.vmem %s2, %s274
          %s276 = smul.u32 4, %s22
        $region36: #{tpu_custom_call.1} parent=27 // pred_fallthru
          _
        // Predicated region
        $region37: #{tpu_custom_call.1} parent=27 // pred_check
          %p277 = pneg %p151
        $region38: #{tpu_custom_call.1} parent=27 // pred_check_branch
          %279 = sbr.rel (%p277) target = $region40
        $region39: #{tpu_custom_call.1} parent=27 // pred_region
          %s280 = smul.u32 4, %s22
          %p281 = scmp.lt.s32.totalorder %s280, 7
          %s282 = scalar_select %p281, %s280, 7
          %s283 = smul.addr %s282, 8
          %s284 = scalar_lea.vmem %s4, %s283
          %s285 = smul.u32 4, %s22
        $region40: #{tpu_custom_call.1} parent=27 // pred_fallthru
          _
      $region28: #{tpu_custom_call.1} parent=5 // pred_fallthru
        _
      %p286 = scmp.le.s32.totalorder 1, %s15
      %p287 = scmp.lt.s32.totalorder %s15, 3
      %p288 = pnand %p286, %p287
      %p289 = pneg %p288
      // Predicated region
      $region41: #{tpu_custom_call.1} parent=5 // pred_check
        _
      $region42: #{tpu_custom_call.1} parent=5 // pred_check_branch
        %291 = sbr.rel (%p288) target = $region44
      $region43: #{tpu_custom_call.1} parent=5 // pred_region
        %s292 = ssub.s32 %s15, 1
        %s293 = sand.u32 %s40, 1
        %s294 = scalar_lea.sflag [#allocation5], %s293
        %s295 = sand.u32 %s40, 1
        %s296 = smul.addr %s295, 32
        %s297 = scalar_lea.vmem [#allocation4], %s296
        // Predicated region
        $region45: #{tpu_custom_call.1} parent=43 // pred_check
          %p298 = pneg %p53
        $region46: #{tpu_custom_call.1} parent=43 // pred_check_branch
          %300 = sbr.rel (%p298) target = $region48
        $region47: #{tpu_custom_call.1} parent=43 // pred_region
          %301 = dma.done %s294, 512
        $region48: #{tpu_custom_call.1} parent=43 // pred_fallthru
          _
        %s302 = sand.u32 %s40, 1
        %s303 = scalar_lea.sflag [#allocation5], %s302
        %s304 = sand.u32 %s40, 1
        %s305 = smul.addr %s304, 32
        %s306 = scalar_lea.vmem [#allocation4], %s305
        %p307 = pneg %p53
        %p308 = pneg %p50
        %p309 = scmp.lt.s32.totalorder %s25, 0
        %s310 = scalar_select %p309, %s25, 0
        %s311 = smul.addr %s310, 8
        %s312 = scalar_lea.vmem %s1, %s311
        %p313 = pneg %p79
        %p314 = pneg %p76
        %s315 = smul.u32 4, %s24
        %p316 = scmp.lt.s32.totalorder %s315, 7
        %s317 = scalar_select %p316, %s315, 7
        %s318 = smul.addr %s317, 8
        %s319 = scalar_lea.vmem %s2, %s318
        %p320 = pneg %p105
        %p321 = pneg %p102
        %p322 = scmp.lt.s32.totalorder %s25, 0
        %s323 = scalar_select %p322, %s25, 0
        %s324 = scalar_lea.vmem %s3, %s323
        %p325 = pneg %p131
        %p326 = pneg %p128
        %s327 = smul.u32 4, %s24
        %p328 = scmp.lt.s32.totalorder %s327, 7
        %s329 = scalar_select %p328, %s327, 7
        %s330 = smul.addr %s329, 8
        %s331 = scalar_lea.vmem %s4, %s330
        %p332 = pneg %p157
        %p333 = pneg %p154
        %p334 = scmp.lt.s32.totalorder %s25, 0
        %s335 = scalar_select %p334, %s25, 0
        %s336 = scalar_lea.vmem %s5, %s335
        %p337 = pneg %p183
        %p338 = pneg %p180
        %p339 = pneg %p209
        %p340 = pneg %p206
        %s341 = smul.u32 4, %s24
        %p342 = scmp.lt.s32.totalorder %s341, 7
        %s343 = scalar_select %p342, %s341, 7
        %s344 = smul.addr %s343, 8
        %s345 = scalar_lea.vmem %s6, %s344
        %s346 = smul.u32 4, %s24
        %p347 = scmp.lt.s32.totalorder %s25, 0
        %s348 = scalar_select %p347, %s25, 0
        %s349 = smul.addr %s348, 8
        %s350 = scalar_lea.vmem %s1, %s349
        %s351 = smul.u32 4, %s24
        %p352 = scmp.lt.s32.totalorder %s351, 7
        %s353 = scalar_select %p352, %s351, 7
        %s354 = smul.addr %s353, 8
        %s355 = scalar_lea.vmem %s2, %s354
        %s356 = smul.u32 4, %s24
        %p357 = scmp.lt.s32.totalorder %s25, 0
        %s358 = scalar_select %p357, %s25, 0
        %s359 = scalar_lea.vmem %s3, %s358
        %s360 = smul.u32 4, %s24
        %p361 = scmp.lt.s32.totalorder %s360, 7
        %s362 = scalar_select %p361, %s360, 7
        %s363 = smul.addr %s362, 8
        %s364 = scalar_lea.vmem %s4, %s363
        %s365 = smul.u32 4, %s24
        %p366 = scmp.lt.s32.totalorder %s25, 0
        %s367 = scalar_select %p366, %s25, 0
        %s368 = scalar_lea.vmem %s5, %s367
        %s369 = smul.u32 4, %s24
        %p370 = scmp.lt.s32.totalorder %s369, 7
        %s371 = scalar_select %p370, %s369, 7
        %s372 = smul.addr %s371, 8
        %s373 = scalar_lea.vmem %s6, %s372
        %s374 = smul.u32 4, %s24
        %p375 = scmp.eq.s32.totalorder %s25, 0
        // Predicated region
        $region49: #{tpu_custom_call.1} parent=43 // pred_check
          %p376 = pneg %p375
        $region50: #{tpu_custom_call.1} parent=43 // pred_check_branch
          %378 = sbr.rel (%p376) target = $region52
        $region51: #{tpu_custom_call.1} parent=43 // pred_region
          %vm379 = vcmask 7168
          %380 = vst.msk [vmem:[#allocation2] sm:$0xff] %vm379, 0.0
          %381 = vst.msk [vmem:[#allocation2 + $0x8] sm:$0xff] %vm379, 0.0
          %382 = vst.msk [vmem:[#allocation2 + $0x10] sm:$0xff] %vm379, 0.0
          %383 = vst.msk [vmem:[#allocation2 + $0x18] sm:$0xff] %vm379, 0.0
          %384 = vst.msk [vmem:[#allocation3] sm:$0xff] %vm379, inf
          %385 = vst.msk [vmem:[#allocation3 + $0x8] sm:$0xff] %vm379, inf
          %386 = vst.msk [vmem:[#allocation3 + $0x10] sm:$0xff] %vm379, inf
          %387 = vst.msk [vmem:[#allocation3 + $0x18] sm:$0xff] %vm379, inf
        $region52: #{tpu_custom_call.1} parent=43 // pred_fallthru
          _
        %v388 = vld [vmem:[%s297] sm:$0xff]
        %v389 = vld [vmem:[%s297 + $0x8] sm:$0xff]
        %v390 = vld [vmem:[%s297 + $0x10] sm:$0xff]
        %v391 = vld [vmem:[%s297 + $0x18] sm:$0xff]
        %v392 = vld [vmem:[%s350] sm:$0xff]
        %v393 = vld [vmem:[%s350 + $0x8] sm:$0xff]
        %v394 = vld [vmem:[%s350 + $0x10] sm:$0xff]
        %v395 = vld [vmem:[%s350 + $0x18] sm:$0xff]
        %v396 = vld [vmem:[%s350 + $0x20] sm:$0xff]
        %v397 = vld [vmem:[%s350 + $0x28] sm:$0xff]
        %v398 = vld [vmem:[%s350 + $0x30] sm:$0xff]
        %v399 = vld [vmem:[%s350 + $0x38] sm:$0xff]
        %v400 = vld [vmem:[%s350 + $0x40] sm:$0xff]
        %v401 = vld [vmem:[%s350 + $0x48] sm:$0xff]
        %v402 = vld [vmem:[%s350 + $0x50] sm:$0xff]
        %v403 = vld [vmem:[%s350 + $0x58] sm:$0xff]
        %v404 = vld [vmem:[%s350 + $0x60] sm:$0xff]
        %v405 = vld [vmem:[%s350 + $0x68] sm:$0xff]
        %v406 = vld [vmem:[%s350 + $0x70] sm:$0xff]
        %v407 = vld [vmem:[%s350 + $0x78] sm:$0xff]
        %408 = vmatprep.subr.mxu0 0.0
        %409 = vmatpush1.msra.mxu0 %v407
        %410 = vmatprep.subr.mxu0 0.0
        %411 = vmatpush1.msra.mxu0 %v406
        %412 = vmatprep.subr.mxu0 0.0
        %413 = vmatpush1.msra.mxu0 %v405
        %414 = vmatprep.subr.mxu0 0.0
        %415 = vmatpush1.msra.mxu0 %v404
        %416 = vmatprep.subr.mxu0 0.0
        %417 = vmatpush1.msra.mxu0 %v403
        %418 = vmatprep.subr.mxu0 0.0
        %419 = vmatpush1.msra.mxu0 %v402
        %420 = vmatprep.subr.mxu0 0.0
        %421 = vmatpush1.msra.mxu0 %v401
        %422 = vmatprep.subr.mxu0 0.0
        %423 = vmatpush1.msra.mxu0 %v400
        %424 = vmatprep.subr.mxu0 0.0
        %425 = vmatpush1.msra.mxu0 %v399
        %426 = vmatprep.subr.mxu0 0.0
        %427 = vmatpush1.msra.mxu0 %v398
        %428 = vmatprep.subr.mxu0 0.0
        %429 = vmatpush1.msra.mxu0 %v397
        %430 = vmatprep.subr.mxu0 0.0
        %431 = vmatpush1.msra.mxu0 %v396
        %432 = vmatprep.subr.mxu0 0.0
        %433 = vmatpush1.msra.mxu0 %v395
        %434 = vmatprep.subr.mxu0 0.0
        %435 = vmatpush1.msra.mxu0 %v394
        %436 = vmatprep.subr.mxu0 0.0
        %437 = vmatpush1.msra.mxu0 %v393
        %438 = vmatprep.subr.mxu0 0.0
        %439 = vmatpush1.msra.mxu0 %v392
        %440 = vmatprep.subr.mxu0 0.0
        %441 = vmatpush2.msra.mxu0 0.0
        %442 = vmatprep.subr.mxu0 0.0
        %443 = vmatpush2.msra.mxu0 0.0
        %444 = vmatprep.subr.mxu0 0.0
        %445 = vmatpush2.msra.mxu0 0.0
        %446 = vmatprep.subr.mxu0 0.0
        %447 = vmatpush2.msra.mxu0 0.0
        %448 = vmatprep.subr.mxu0 0.0
        %449 = vmatpush2.msra.mxu0 0.0
        %450 = vmatprep.subr.mxu0 0.0
        %451 = vmatpush2.msra.mxu0 0.0
        %452 = vmatprep.subr.mxu0 0.0
        %453 = vmatpush2.msra.mxu0 0.0
        %454 = vmatprep.subr.mxu0 0.0
        %455 = vmatpush2.msra.mxu0 0.0
        %456 = vmatprep.subr.mxu0 0.0
        %457 = vmatpush2.msra.mxu0 0.0
        %458 = vmatprep.subr.mxu0 0.0
        %459 = vmatpush2.msra.mxu0 0.0
        %460 = vmatprep.subr.mxu0 0.0
        %461 = vmatpush2.msra.mxu0 0.0
        %462 = vmatprep.subr.mxu0 0.0
        %463 = vmatpush2.msra.mxu0 0.0
        %464 = vmatprep.subr.mxu0 0.0
        %465 = vmatpush2.msra.mxu0 0.0
        %466 = vmatprep.subr.mxu0 0.0
        %467 = vmatpush2.msra.mxu0 0.0
        %468 = vmatprep.subr.mxu0 0.0
        %469 = vmatpush2.msra.mxu0 0.0
        %470 = vmatprep.subr.mxu0 0.0
        %471 = vmatpush2.msra.mxu0 0.0
        %472 = vmatprep.mubr.f32.mxu0 0.0
        %473 = vmatmul.mubr.f32.gmra.mxu0 %v388
        %v474 = vpop.f32.mrf.mxu0
        %v475 = vadd.f32 0.0, %v474
        %v476 = vpop.f32.mrf.mxu0
        %477 = vmatprep.mubr.f32.mxu0 0.0
        %478 = vmatmul.mubr.f32.gmra.mxu0 %v389
        %v479 = vpop.f32.mrf.mxu0
        %v480 = vadd.f32 0.0, %v479
        %v481 = vpop.f32.mrf.mxu0
        %482 = vmatprep.mubr.f32.mxu0 0.0
        %483 = vmatmul.mubr.f32.gmra.mxu0 %v390
        %v484 = vpop.f32.mrf.mxu0
        %v485 = vadd.f32 0.0, %v484
        %v486 = vpop.f32.mrf.mxu0
        %487 = vmatprep.mubr.f32.mxu0 0.0
        %488 = vmatmul.mubr.f32.gmra.mxu0 %v391
        %v489 = vpop.f32.mrf.mxu0
        %v490 = vadd.f32 0.0, %v489
        %v491 = vpop.f32.mrf.mxu0
        %492 = vdwg.mxu0
        %v493 = vld [vmem:[%s355] sm:$0xff]
        %v494 = vld [vmem:[%s355 + $0x8] sm:$0xff]
        %v495 = vld [vmem:[%s355 + $0x10] sm:$0xff]
        %v496 = vld [vmem:[%s355 + $0x18] sm:$0xff]
        %v497 = vld [vmem:[%s359] sm:$0x1]
        %499 = vset.pattern.permute.xlu0 0
        %500 = vperm.xlu0 %499, %v493
        %v501 = vpop.permute.xlu0 %500
        %504 = vset.pattern.permute.xlu0 0
        %505 = vperm.xlu0 %504, %v494
        %v506 = vpop.permute.xlu0 %505
        %509 = vset.pattern.permute.xlu0 0
        %510 = vperm.xlu0 %509, %v495
        %v511 = vpop.permute.xlu0 %510
        %514 = vset.pattern.permute.xlu0 0
        %515 = vperm.xlu0 %514, %v496
        %v516 = vpop.permute.xlu0 %515
        %v519 = vlaneseq
        %v520 = vshrl.u32 %v519, 7
        %v521 = vsub.s32 0, %v520
        %v522 = vrot.slane %v497, %v521
        %v524 = vadd.f32 %v501, %v522
        %v525 = vadd.f32 %v506, %v522
        %v526 = vadd.f32 %v511, %v522
        %v527 = vadd.f32 %v516, %v522
        %v528 = vmul.f32 %v475, 2.0
        %v529 = vmul.f32 %v480, 2.0
        %v530 = vmul.f32 %v485, 2.0
        %v531 = vmul.f32 %v490, 2.0
        %v532 = vsub.f32 %v524, %v528
        %v533 = vsub.f32 %v525, %v529
        %v534 = vsub.f32 %v526, %v530
        %v535 = vsub.f32 %v527, %v531
        %v536 = vld [vmem:[%s364] sm:$0xff]
        %v537 = vld [vmem:[%s364 + $0x8] sm:$0xff]
        %v538 = vld [vmem:[%s364 + $0x10] sm:$0xff]
        %v539 = vld [vmem:[%s364 + $0x18] sm:$0xff]
        %v540 = vld [vmem:[%s368] sm:$0x1]
        %541 = vset.pattern.permute.xlu0 0
        %542 = vperm.xlu0 %541, %v536
        %v543 = vpop.permute.xlu0 %542
        %544 = vset.pattern.permute.xlu0 0
        %545 = vperm.xlu0 %544, %v537
        %v546 = vpop.permute.xlu0 %545
        %547 = vset.pattern.permute.xlu0 0
        %548 = vperm.xlu0 %547, %v538
        %v549 = vpop.permute.xlu0 %548
        %550 = vset.pattern.permute.xlu0 0
        %551 = vperm.xlu0 %550, %v539
        %v552 = vpop.permute.xlu0 %551
        %v553 = vlaneseq
        %v554 = vshrl.u32 %v553, 7
        %v555 = vsub.s32 0, %v554
        %v556 = vrot.slane %v540, %v555
        %vm557 = vcmp.eq.s32.totalorder %v543, %v556
        %vm558 = vcmp.eq.s32.totalorder %v546, %v556
        %vm559 = vcmp.eq.s32.totalorder %v549, %v556
        %vm560 = vcmp.eq.s32.totalorder %v552, %v556
        %v561 = vlaneseq
        %v562 = vshrl.u32 %v561, 7
        %v563 = vadd.s32 %v562, 8
        %v564 = vadd.s32 %v562, 16
        %v565 = vadd.s32 %v562, 24
        %s566 = smul.u32 %s24, 32
        %v567 = vstv %s566
        %v568 = vadd.s32 %v562, %v567
        %v569 = vadd.s32 %v563, %v567
        %v570 = vadd.s32 %v564, %v567
        %v571 = vadd.s32 %v565, %v567
        %v572 = vlaneseq
        %v573 = vand.u32 %v572, 127
        %s574 = smul.u32 %s25, 128
        %v575 = vstv %s574
        %v576 = vadd.s32 %v573, %v575
        %vm577 = vcmp.ne.s32.totalorder %v568, %v576
        %vm578 = vcmp.ne.s32.totalorder %v569, %v576
        %vm579 = vcmp.ne.s32.totalorder %v570, %v576
        %vm580 = vcmp.ne.s32.totalorder %v571, %v576
        %vm581 = vmand %vm557, %vm577
        %vm582 = vmand %vm558, %vm578
        %vm583 = vmand %vm559, %vm579
        %vm584 = vmand %vm560, %vm580
        %v585 = vsel %vm581, %v532, 0.0
        %v586 = vsel %vm582, %v533, 0.0
        %v587 = vsel %vm583, %v534, 0.0
        %v588 = vsel %vm584, %v535, 0.0
        %v589 = vsel %vm557, 0.0, %v532
        %v590 = vsel %vm558, 0.0, %v533
        %v591 = vsel %vm559, 0.0, %v534
        %v592 = vsel %vm560, 0.0, %v535
        %v593 = vld [vmem:[#allocation2] sm:$0xff]
        %v594 = vld [vmem:[#allocation2 + $0x8] sm:$0xff]
        %v595 = vld [vmem:[#allocation2 + $0x10] sm:$0xff]
        %v596 = vld [vmem:[#allocation2 + $0x18] sm:$0xff]
        %597 = vmax.xlane.f32.xlu0 %v585
        %v598 = vpop.xlane.xlu0 %597
        %599 = vmax.xlane.f32.xlu0 %v586
        %v600 = vpop.xlane.xlu0 %599
        %601 = vmax.xlane.f32.xlu0 %v587
        %v602 = vpop.xlane.xlu0 %601
        %603 = vmax.xlane.f32.xlu0 %v588
        %v604 = vpop.xlane.xlu0 %603
        %v605 = vmax.f32 %v593, %v598
        %v606 = vmax.f32 %v594, %v600
        %v607 = vmax.f32 %v595, %v602
        %v608 = vmax.f32 %v596, %v604
        %vm609 = vcmask 7168
        %610 = vst.msk [vmem:[#allocation2] sm:$0xff] %vm609, %v605
        %611 = vst.msk [vmem:[#allocation2 + $0x8] sm:$0xff] %vm609, %v606
        %612 = vst.msk [vmem:[#allocation2 + $0x10] sm:$0xff] %vm609, %v607
        %613 = vst.msk [vmem:[#allocation2 + $0x18] sm:$0xff] %vm609, %v608
        %v614 = vld [vmem:[#allocation3] sm:$0xff]
        %v615 = vld [vmem:[#allocation3 + $0x8] sm:$0xff]
        %v616 = vld [vmem:[#allocation3 + $0x10] sm:$0xff]
        %v617 = vld [vmem:[#allocation3 + $0x18] sm:$0xff]
        %618 = vmin.xlane.f32.xlu0 %v589
        %v619 = vpop.xlane.xlu0 %618
        %620 = vmin.xlane.f32.xlu0 %v590
        %v621 = vpop.xlane.xlu0 %620
        %622 = vmin.xlane.f32.xlu0 %v591
        %v623 = vpop.xlane.xlu0 %622
        %624 = vmin.xlane.f32.xlu0 %v592
        %v625 = vpop.xlane.xlu0 %624
        %v626 = vmin.f32 %v614, %v619
        %v627 = vmin.f32 %v615, %v621
        %v628 = vmin.f32 %v616, %v623
        %v629 = vmin.f32 %v617, %v625
        %630 = vst.msk [vmem:[#allocation3] sm:$0xff] %vm609, %v626
        %631 = vst.msk [vmem:[#allocation3 + $0x8] sm:$0xff] %vm609, %v627
        %632 = vst.msk [vmem:[#allocation3 + $0x10] sm:$0xff] %vm609, %v628
        %633 = vst.msk [vmem:[#allocation3 + $0x18] sm:$0xff] %vm609, %v629
        // Predicated region
        $region53: #{tpu_custom_call.1} parent=43 // pred_check
          %p634 = pneg %p375
        $region54: #{tpu_custom_call.1} parent=43 // pred_check_branch
          %636 = sbr.rel (%p634) target = $region56
        $region55: #{tpu_custom_call.1} parent=43 // pred_region
          %v637 = vld [vmem:[#allocation2] sm:$0xff]
          %v638 = vld [vmem:[#allocation2 + $0x8] sm:$0xff]
          %v639 = vld [vmem:[#allocation2 + $0x10] sm:$0xff]
          %v640 = vld [vmem:[#allocation2 + $0x18] sm:$0xff]
          %v641 = vrsqrt.pop %v637
          %v642 = vmul.f32 %v637, %v641
          %vm643 = vcmp.eq.f32.partialorder %v637, inf
          %v644 = vsel %vm643, %v637, %v642
          %vm645 = vcmp.eq.f32.partialorder %v637, 0.0
          %v646 = vand.u32 %v637, 2147483648
          %v647 = vsel %vm645, %v646, %v644
          %v648 = vrsqrt.pop %v638
          %v649 = vmul.f32 %v638, %v648
          %vm650 = vcmp.eq.f32.partialorder %v638, inf
          %v651 = vsel %vm650, %v638, %v649
          %vm652 = vcmp.eq.f32.partialorder %v638, 0.0
          %v653 = vand.u32 %v638, 2147483648
          %v654 = vsel %vm652, %v653, %v651
          %v655 = vrsqrt.pop %v639
          %v656 = vmul.f32 %v639, %v655
          %vm657 = vcmp.eq.f32.partialorder %v639, inf
          %v658 = vsel %vm657, %v639, %v656
          %vm659 = vcmp.eq.f32.partialorder %v639, 0.0
          %v660 = vand.u32 %v639, 2147483648
          %v661 = vsel %vm659, %v660, %v658
          %v662 = vrsqrt.pop %v640
          %v663 = vmul.f32 %v640, %v662
          %vm664 = vcmp.eq.f32.partialorder %v640, inf
          %v665 = vsel %vm664, %v640, %v663
          %vm666 = vcmp.eq.f32.partialorder %v640, 0.0
          %v667 = vand.u32 %v640, 2147483648
          %v668 = vsel %vm666, %v667, %v665
          %v669 = vld [vmem:[#allocation3] sm:$0xff]
          %v670 = vld [vmem:[#allocation3 + $0x8] sm:$0xff]
          %v671 = vld [vmem:[#allocation3 + $0x10] sm:$0xff]
          %v672 = vld [vmem:[#allocation3 + $0x18] sm:$0xff]
          %v673 = vmax.f32 %v669, 0.0
          %v674 = vmax.f32 %v670, 0.0
          %v675 = vmax.f32 %v671, 0.0
          %v676 = vmax.f32 %v672, 0.0
          %v677 = vrsqrt.pop %v673
          %v678 = vmul.f32 %v673, %v677
          %vm679 = vcmp.eq.f32.partialorder %v673, inf
          %v680 = vsel %vm679, %v673, %v678
          %vm681 = vcmp.eq.f32.partialorder %v673, 0.0
          %v682 = vand.u32 %v673, 2147483648
          %v683 = vsel %vm681, %v682, %v680
          %v684 = vrsqrt.pop %v674
          %v685 = vmul.f32 %v674, %v684
          %vm686 = vcmp.eq.f32.partialorder %v674, inf
          %v687 = vsel %vm686, %v674, %v685
          %vm688 = vcmp.eq.f32.partialorder %v674, 0.0
          %v689 = vand.u32 %v674, 2147483648
          %v690 = vsel %vm688, %v689, %v687
          %v691 = vrsqrt.pop %v675
          %v692 = vmul.f32 %v675, %v691
          %vm693 = vcmp.eq.f32.partialorder %v675, inf
          %v694 = vsel %vm693, %v675, %v692
          %vm695 = vcmp.eq.f32.partialorder %v675, 0.0
          %v696 = vand.u32 %v675, 2147483648
          %v697 = vsel %vm695, %v696, %v694
          %v698 = vrsqrt.pop %v676
          %v699 = vmul.f32 %v676, %v698
          %vm700 = vcmp.eq.f32.partialorder %v676, inf
          %v701 = vsel %vm700, %v676, %v699
          %vm702 = vcmp.eq.f32.partialorder %v676, 0.0
          %v703 = vand.u32 %v676, 2147483648
          %v704 = vsel %vm702, %v703, %v701
          %v705 = vsub.f32 %v647, %v683
          %v706 = vsub.f32 %v654, %v690
          %v707 = vsub.f32 %v661, %v697
          %v708 = vsub.f32 %v668, %v704
          %v709 = vadd.f32 %v705, 0.5
          %v710 = vadd.f32 %v706, 0.5
          %v711 = vadd.f32 %v707, 0.5
          %v712 = vadd.f32 %v708, 0.5
          %v713 = vmax.f32 %v709, 0.0
          %v714 = vmax.f32 %v710, 0.0
          %v715 = vmax.f32 %v711, 0.0
          %v716 = vmax.f32 %v712, 0.0
          %717 = vst.msk [vmem:[%s373] sm:$0xff] %vm609, %v713
          %718 = vst.msk [vmem:[%s373 + $0x8] sm:$0xff] %vm609, %v714
          %719 = vst.msk [vmem:[%s373 + $0x10] sm:$0xff] %vm609, %v715
          %720 = vst.msk [vmem:[%s373 + $0x18] sm:$0xff] %vm609, %v716
        $region56: #{tpu_custom_call.1} parent=43 // pred_fallthru
          _
        %s721 = smul.u32 4, %s24
        %p722 = scmp.lt.s32.totalorder %s721, 7
        %s723 = scalar_select %p722, %s721, 7
        %s724 = smul.addr %s723, 8
        %s725 = scalar_lea.vmem %s6, %s724
        // Predicated region
        $region57: #{tpu_custom_call.1} parent=43 // pred_check
          %p726 = pneg %p206
        $region58: #{tpu_custom_call.1} parent=43 // pred_check_branch
          %728 = sbr.rel (%p726) target = $region60
        $region59: #{tpu_custom_call.1} parent=43 // pred_region
          %s729 = smul.u32 4, %s24
        $region60: #{tpu_custom_call.1} parent=43 // pred_fallthru
          _
      $region44: #{tpu_custom_call.1} parent=5 // pred_fallthru
        _
      %p730 = scmp.le.s32.totalorder 2, %s15
      // Predicated region
      $region61: #{tpu_custom_call.1} parent=5 // pred_check
        %p731 = pneg %p730
      $region62: #{tpu_custom_call.1} parent=5 // pred_check_branch
        %733 = sbr.rel (%p731) target = $region64
      $region63: #{tpu_custom_call.1} parent=5 // pred_region
        %s734 = ssub.s32 %s15, 2
        // Predicated region
        $region65: #{tpu_custom_call.1} parent=63 // pred_check
          %p735 = pneg %p212
        $region66: #{tpu_custom_call.1} parent=63 // pred_check_branch
          %737 = sbr.rel (%p735) target = $region68
        $region67: #{tpu_custom_call.1} parent=63 // pred_region
          %s738 = smul.u32 4, %s26
          %p739 = scmp.lt.s32.totalorder %s738, 7
          %s740 = scalar_select %p739, %s738, 7
          %s741 = smul.addr %s740, 8
          %s742 = scalar_lea.vmem %s6, %s741
        $region68: #{tpu_custom_call.1} parent=63 // pred_fallthru
          _
      $region64: #{tpu_custom_call.1} parent=5 // pred_fallthru
        _
    $region6: #{tpu_custom_call.1} parent=1 // loop_footer
      %s19 = sadd.s32 1, %s15
    $region7: #{tpu_custom_call.1} parent=1 // loop_footer_branch
      %14 = sbr.rel target = $region3
    $region8: #{tpu_custom_call.1} parent=1 // loop_exit
      _
    %743 = vsyncpa [#allocation5], 1
    %s744 = scalar_lea.sflag [#allocation5], 1
    %745 = vsyncpa %s744, 1

</llo_original>
